<compile_context>
chip_gen: v7x
topology: tpu7x:2x2x1
jax: 0.10.0
libtpu: 0.0.40
codegen_flags: <defaults>
</compile_context>

<pallas_src>
import functools
import math

import jax
import jax.numpy as jnp
import numpy as np
from jax.experimental import pallas as pl
from jax.experimental.pallas import tpu as pltpu


def _patch_embed_kernel(x_ref, w_ref, add_ref, o_ref, *, patch_len, stride,
                        num_patches, compute_dtype):
    """One tile of `tn` signal rows -> their (num_patches, d_model) embeddings.

    x_ref  : (tn, L)                  lane-dense raw signal rows
    w_ref  : (patch_len, d_model)     value-embedding weight (grid-invariant)
    add_ref: (tn*P, d_model) or (1, d_model)  bias [+ fused sincos pos-embed]
    o_ref  : (tn*P, d_model)          lane-dense output slab
    """
    tn = x_ref.shape[0]
    x = x_ref[...].astype(compute_dtype)

    # In-VMEM unfold: the overlapping patch windows are static lane slices of
    # the SAME VMEM tile, so the unfold never touches HBM (input traffic stays
    # 1x) and arbitrary (patch_len, stride) combinations are supported.
    patches = jnp.stack(
        [x[:, p * stride:p * stride + patch_len] for p in range(num_patches)],
        axis=1)                                       # (tn, P, patch_len)
    lhs = patches.reshape(tn * num_patches, patch_len)

    # Single MXU matmul over the full K=patch_len contraction, f32 accumulate;
    # no zero-init and no per-step accumulator read/modify/write passes.
    acc = jnp.dot(lhs, w_ref[...], preferred_element_type=jnp.float32)

    # One fused epilogue pass: bias (+ positional embedding) added together,
    # then the lane-dense store.
    o_ref[...] = (acc + add_ref[...]).astype(o_ref.dtype)


def sincos_positional_encoding(q_len, d_model, normalize=True):
    """PositionalEncoding(q_len, d_model, normalize) from the PyTorch spec."""
    if d_model % 2 != 0:
        raise ValueError("d_model must be even for sincos positional encoding.")
    position = jnp.arange(q_len, dtype=jnp.float32)[:, None]
    div_term = jnp.exp(jnp.arange(0, d_model, 2, dtype=jnp.float32)
                       * -(math.log(10000.0) / d_model))
    pe = jnp.zeros((q_len, d_model), jnp.float32)
    pe = pe.at[:, 0::2].set(jnp.sin(position * div_term))
    pe = pe.at[:, 1::2].set(jnp.cos(position * div_term))
    if normalize:
        pe = pe - pe.mean()
        pe = pe / (jnp.std(pe, ddof=1) * 10.0)        # torch.std() is unbiased
    return pe


def patch_embedding_forward(x, params, *, patch_len, stride, seq_len=None,
                            pos_embed_type=None, x_mark=None, ch_ind=0,
                            tile_rows=256, compute_dtype=jnp.float32):
    """Faithful PatchEmbedding.forward (inference).  x: (B, n_vars, L) float32.

    `compute_dtype=jnp.bfloat16` feeds the MXU natively on v6e/v7x (halves the
    LHS VMEM footprint / MXU passes); accumulation stays f32.  Returns
    (embeddings, n_vars) like the PyTorch module.
    """
    # TODO(synk): `process_layer` is an externally injected module; identity here.
    n_vars = x.shape[1]

    if x_mark is not None and not ch_ind:
        x = jnp.concatenate([x, x_mark], axis=1)

    batch, c_total, l = x.shape
    w, bias = params["w"], params["b"]
    d_model = w.shape[-1]
    num_patches = (l - patch_len) // stride + 1
    assert num_patches >= 1, "sequence shorter than one patch"

    if pos_embed_type not in (None, "sincos"):
        # TODO(synk): 'rnn'/'localrnn'/coord/learnable pos-embed variants not ported.
        raise NotImplementedError(f"pos_embed_type={pos_embed_type!r} not ported")

    q_len = seq_len if seq_len is not None else l
    pe = (sincos_positional_encoding(q_len, d_model, normalize=True)
          if pos_embed_type == "sincos" else None)

    n_rows = batch * c_total
    x_rows = x.reshape(n_rows, l)

    # ---- tile-row selection (no divisor search / no degenerate tn) ----------
    # tn must be a multiple of 8 (sublane rule on the (tn, L) and (tn*P, D)
    # blocks when grid > 1) and, when the pe add is fused, a multiple of C so
    # the per-tile pe slab is identical for every tile (fetched once).
    per_row_bytes = 4 * (l + 3 * num_patches * d_model)   # in + out + acc, f32
    budget = 40 << 20                                     # headroom on v7x's 64 MiB VMEM
    fuse_pe = pe is not None
    unit = 8
    if fuse_pe:
        unit = 8 * c_total // math.gcd(8, c_total)        # lcm(8, C)
        if 2 * per_row_bytes * unit > budget:
            fuse_pe, unit = False, 8                      # huge C*P*D: un-fused fallback
    tn = max(unit, (min(tile_rows, n_rows) // unit) * unit)
    # Keep >= 2 grid steps when possible so the "parallel" row axis shards
    # across both v7x TensorCores (v5e/v6e are single-TC; harmless there).
    if tn >= n_rows and n_rows > unit:
        tn = max(unit, (n_rows // 2 // unit) * unit)
    while tn > unit and 2 * per_row_bytes * tn > budget:
        tn -= unit

    n_rows_p = -(-n_rows // tn) * tn
    if n_rows_p != n_rows:
        # Pad rows instead of shrinking tn to 1; the garbage rows are sliced
        # off after the kernel (one extra output-sized pass only when padding
        # is actually needed).
        x_rows = jnp.pad(x_rows, ((0, n_rows_p - n_rows), (0, 0)))
    grid = (n_rows_p // tn,)

    # ---- epilogue add slab: bias (+ fused sincos positional embedding) ------
    # Output row (signal row r, patch p) receives pe[((r % C) * P + p) % C]
    # (derived from torch.reshape((B,C,P,D) -> (B*P,C,D)) + pe over dim 1).
    # Grid-invariant because tn % C == 0.
    if fuse_pe:
        row_c = np.arange(tn) % c_total
        pp = np.arange(num_patches)
        pe_idx = (row_c[:, None] * num_patches + pp[None, :]) % c_total
        add_slab = pe[pe_idx.reshape(-1)] + bias[None, :]          # (tn*P, D)
    else:
        add_slab = bias.reshape(1, d_model)
    add_slab = add_slab.astype(jnp.float32)

    kernel = functools.partial(
        _patch_embed_kernel, patch_len=patch_len, stride=stride,
        num_patches=num_patches, compute_dtype=compute_dtype)

    out_rows = n_rows_p * num_patches
    in_tile = tn * l * 4
    out_tile = tn * num_patches * d_model * 4
    fixed = 2 * (patch_len * d_model * 4 + add_slab.size * 4)
    vmem_limit = int(min(max(2 * (in_tile + out_tile) + out_tile + fixed + (8 << 20),
                             16 << 20), 64 << 20))

    out2d = pl.pallas_call(
        kernel,
        out_shape=jax.ShapeDtypeStruct((out_rows, d_model), jnp.float32),
        grid_spec=pltpu.PrefetchScalarGridSpec(
            num_scalar_prefetch=0,
            grid=grid,
            in_specs=[
                # Lane-dense 2-D signal tile: full row (L) in the lane dim.
                pl.BlockSpec((tn, l), lambda i: (i, 0)),
                # Grid-invariant weight + epilogue slab: constant index map, so
                # they are DMA'd once.  TODO(synk): at this size (<~64 KiB)
                # double-buffering them is <0.1% of VMEM; for very large
                # patch_len*d_model on v7x single-buffer via
                # pipeline_mode=pl.Buffered(1).
                pl.BlockSpec((patch_len, d_model), lambda i: (0, 0)),
                pl.BlockSpec(add_slab.shape, lambda i: (0, 0)),
            ],
            out_specs=pl.BlockSpec((tn * num_patches, d_model), lambda i: (i, 0)),
        ),
        compiler_params=pltpu.CompilerParams(
            dimension_semantics=("parallel",),
            vmem_limit_bytes=vmem_limit),
    )(x_rows, w.astype(compute_dtype), add_slab)

    emb = out2d.reshape(n_rows_p, num_patches, d_model)
    if n_rows_p != n_rows:
        emb = emb[:n_rows]

    # torch.reshape(x, (-1, x.shape[1], x.shape[3])) applied to (B, C, P, D):
    # pure row-major regroup, no data movement.
    out = emb.reshape(batch, c_total, num_patches, d_model).reshape(-1, c_total, d_model)

    if pe is not None and not fuse_pe:
        out = out + pe[None, :c_total, :]      # fallback path only (huge C*P*D tiles)

    # nn.Dropout is the identity at inference time.
    return out, n_vars


def patch_embedding_ref(x, params, *, patch_len, stride, seq_len=None,
                        pos_embed_type=None, x_mark=None, ch_ind=0):
    """Pure-JAX reference of the same unfold + Linear (+ sincos pos) math."""
    n_vars = x.shape[1]
    if x_mark is not None and not ch_ind:
        x = jnp.concatenate([x, x_mark], axis=1)
    b, c_total, l = x.shape
    num_patches = (l - patch_len) // stride + 1
    patches = jnp.stack(
        [x[..., p * stride:p * stride + patch_len] for p in range(num_patches)],
        axis=2)                                             # (B, C, P, patch_len)
    emb = patches.astype(jnp.float32) @ params["w"] + params["b"]
    d_model = params["w"].shape[-1]
    out = emb.reshape(-1, c_total, d_model)
    if pos_embed_type == "sincos":
        q_len = seq_len if seq_len is not None else l
        pe = sincos_positional_encoding(q_len, d_model, normalize=True)
        out = out + pe[None, :c_total, :]
    return out, n_vars


def init_params(key, patch_len, d_model):
    """PyTorch nn.Linear-style init: U(-1/sqrt(fan_in), 1/sqrt(fan_in)).

    Weight stored pre-transposed as (patch_len, d_model) for the kernel.
    """
    bound = 1.0 / math.sqrt(patch_len)
    kw, kb = jax.random.split(key)
    w = jax.random.uniform(kw, (patch_len, d_model), jnp.float32, -bound, bound)
    b = jax.random.uniform(kb, (d_model,), jnp.float32, -bound, bound)
    return {"w": w, "b": b}


if __name__ == "__main__":
    key = jax.random.PRNGKey(0)
    kx, kp, kx2, kp2 = jax.random.split(key, 4)

    # --- Check 1: lane-dense demo shapes, 2 "parallel" grid steps ------------
    B, C, L = 4, 4, 72           # (batch, n_vars, sequence length)
    patch_len, stride = 16, 8    # 8 patches per series, 2x window overlap
    d_model = 128                # lane-dense output width

    x = jax.random.normal(kx, (B, C, L), dtype=jnp.float32)
    params = init_params(kp, patch_len, d_model)

    out, n_vars = patch_embedding_forward(
        x, params, patch_len=patch_len, stride=stride, seq_len=L,
        pos_embed_type="sincos")
    out = jax.block_until_ready(out)

    ref, n_vars_ref = patch_embedding_ref(
        x, params, patch_len=patch_len, stride=stride, seq_len=L,
        pos_embed_type="sincos")

    num_patches = (L - patch_len) // stride + 1
    assert out.shape == (B * num_patches, C, d_model)
    assert n_vars == C and n_vars_ref == C
    np.testing.assert_allclose(np.asarray(out), np.asarray(ref),
                               rtol=1e-5, atol=1e-5)

    # --- Check 2: odd channel count (C=5) -> padded rows, fused pe with C ∤ 8 -
    B2, C2, L2 = 3, 5, 40
    x2 = jax.random.normal(kx2, (B2, C2, L2), dtype=jnp.float32)
    params2 = init_params(kp2, patch_len, d_model)

    out2, n_vars2 = patch_embedding_forward(
        x2, params2, patch_len=patch_len, stride=stride, seq_len=L2,
        pos_embed_type="sincos")
    out2 = jax.block_until_ready(out2)

    ref2, _ = patch_embedding_ref(
        x2, params2, patch_len=patch_len, stride=stride, seq_len=L2,
        pos_embed_type="sincos")

    num_patches2 = (L2 - patch_len) // stride + 1
    assert out2.shape == (B2 * num_patches2, C2, d_model)
    assert n_vars2 == C2
    np.testing.assert_allclose(np.asarray(out2), np.asarray(ref2),
                               rtol=1e-5, atol=1e-5)

    print("KERNEL_OK")
</pallas_src>

<mosaic_0001>
module attributes {stable_mosaic.version = 11 : i64} {
  func.func @_patch_embed_kernel(%arg0: i32, %arg1: memref<8x72xf32, #tpu.memory_space<vmem>>, %arg2: memref<16x128xf32, #tpu.memory_space<vmem>>, %arg3: memref<64x128xf32, #tpu.memory_space<vmem>>, %arg4: memref<64x128xf32, #tpu.memory_space<vmem>>) attributes {dimension_semantics = [#tpu.dimension_semantics<parallel>], iteration_bounds = array<i64: 2>, scalar_prefetch = 0 : i64, scratch_operands = 0 : i64, tpu.core_type = #tpu.core_type<tc>, window_params = [{transform_indices = @transform_0, window_bounds = array<i64: 8, 72>}, {pipeline_mode = #tpu.pipeline_mode<synchronous>, transform_indices = @transform_1, window_bounds = array<i64: 16, 128>}, {pipeline_mode = #tpu.pipeline_mode<synchronous>, transform_indices = @transform_2, window_bounds = array<i64: 64, 128>}, {transform_indices = @transform_3, window_bounds = array<i64: 64, 128>}]} {
    %c0 = arith.constant 0 : index
    %c0_0 = arith.constant 0 : index
    %0 = vector.load %arg1[%c0, %c0_0] : memref<8x72xf32, #tpu.memory_space<vmem>>, vector<8x72xf32>
    %1 = vector.extract_strided_slice %0 {offsets = [0, 0], sizes = [8, 16], strides = [1, 1]} : vector<8x72xf32> to vector<8x16xf32>
    %2 = vector.extract_strided_slice %0 {offsets = [0, 8], sizes = [8, 16], strides = [1, 1]} : vector<8x72xf32> to vector<8x16xf32>
    %3 = vector.extract_strided_slice %0 {offsets = [0, 16], sizes = [8, 16], strides = [1, 1]} : vector<8x72xf32> to vector<8x16xf32>
    %4 = vector.extract_strided_slice %0 {offsets = [0, 24], sizes = [8, 16], strides = [1, 1]} : vector<8x72xf32> to vector<8x16xf32>
    %5 = vector.extract_strided_slice %0 {offsets = [0, 32], sizes = [8, 16], strides = [1, 1]} : vector<8x72xf32> to vector<8x16xf32>
    %6 = vector.extract_strided_slice %0 {offsets = [0, 40], sizes = [8, 16], strides = [1, 1]} : vector<8x72xf32> to vector<8x16xf32>
    %7 = vector.extract_strided_slice %0 {offsets = [0, 48], sizes = [8, 16], strides = [1, 1]} : vector<8x72xf32> to vector<8x16xf32>
    %8 = vector.extract_strided_slice %0 {offsets = [0, 56], sizes = [8, 16], strides = [1, 1]} : vector<8x72xf32> to vector<8x16xf32>
    %9 = vector.shape_cast %1 : vector<8x16xf32> to vector<8x1x16xf32>
    %10 = vector.shape_cast %2 : vector<8x16xf32> to vector<8x1x16xf32>
    %11 = vector.shape_cast %3 : vector<8x16xf32> to vector<8x1x16xf32>
    %12 = vector.shape_cast %4 : vector<8x16xf32> to vector<8x1x16xf32>
    %13 = vector.shape_cast %5 : vector<8x16xf32> to vector<8x1x16xf32>
    %14 = vector.shape_cast %6 : vector<8x16xf32> to vector<8x1x16xf32>
    %15 = vector.shape_cast %7 : vector<8x16xf32> to vector<8x1x16xf32>
    %16 = vector.shape_cast %8 : vector<8x16xf32> to vector<8x1x16xf32>
    %17 = tpu.concatenate %9, %10, %11, %12, %13, %14, %15, %16 in 1 : vector<8x1x16xf32>, vector<8x1x16xf32>, vector<8x1x16xf32>, vector<8x1x16xf32>, vector<8x1x16xf32>, vector<8x1x16xf32>, vector<8x1x16xf32>, vector<8x1x16xf32> -> vector<8x8x16xf32>
    %18 = vector.shape_cast %17 : vector<8x8x16xf32> to vector<64x16xf32>
    %c0_1 = arith.constant 0 : index
    %c0_2 = arith.constant 0 : index
    %19 = vector.load %arg2[%c0_1, %c0_2] : memref<16x128xf32, #tpu.memory_space<vmem>>, vector<16x128xf32>
    %cst = arith.constant dense<0.000000e+00> : vector<64x128xf32>
    %20 = tpu.matmul %18, %19, %cst {dimension_numbers = #tpu.dot_dimension_numbers<[1], [0], [0], [1], [0, 0, 1, 1], [], []>} : vector<64x16xf32>, vector<16x128xf32>, vector<64x128xf32> -> vector<64x128xf32>
    %c0_3 = arith.constant 0 : index
    %c0_4 = arith.constant 0 : index
    %21 = vector.load %arg3[%c0_3, %c0_4] : memref<64x128xf32, #tpu.memory_space<vmem>>, vector<64x128xf32>
    %22 = arith.addf %20, %21 : vector<64x128xf32>
    %c0_5 = arith.constant 0 : index
    %c0_6 = arith.constant 0 : index
    %23 = vector.load %arg4[%c0_5, %c0_6] : memref<64x128xf32, #tpu.memory_space<vmem>>, vector<64x128xf32>
    tpu.vector_store %arg4[%c0_5, %c0_6], %22 {strides = array<i32>} : memref<64x128xf32, #tpu.memory_space<vmem>>, vector<64x128xf32>,
    return
  }
  func.func @transform_0(%arg0: i32) -> (i32, i32) {
    %c0_i32 = arith.constant 0 : i32
    %c0_i32_0 = arith.constant 0 : i32
    return %arg0, %c0_i32 : i32, i32
  }
  func.func @transform_1(%arg0: i32) -> (i32, i32) {
    %c0_i32 = arith.constant 0 : i32
    %c0_i32_0 = arith.constant 0 : i32
    %c0_i32_1 = arith.constant 0 : i32
    return %c0_i32, %c0_i32_0 : i32, i32
  }
  func.func @transform_2(%arg0: i32) -> (i32, i32) {
    %c0_i32 = arith.constant 0 : i32
    %c0_i32_0 = arith.constant 0 : i32
    %c0_i32_1 = arith.constant 0 : i32
    return %c0_i32, %c0_i32_0 : i32, i32
  }
  func.func @transform_3(%arg0: i32) -> (i32, i32) {
    %c0_i32 = arith.constant 0 : i32
    %c0_i32_0 = arith.constant 0 : i32
    return %arg0, %c0_i32 : i32, i32
  }
}

</mosaic_0001>

<llo_original>
// kernel: tpu_custom_call.1
$region0: #{tpu_custom_call.1}
  #allocation0 [shape = 'u32[]', space=smem, size = 0x4, offset = 0x4, fixed_abs, tag = 'smem constant byte address 0x4 - core index']
  #allocation1 [shape = 'u32[144,128]{1,0:T(1,128)}', space=vmem, size = 0x12000, scoped, tag = 'internal scratch']
  %s0 = inlined_call_operand.hbm [shape: f32[16,72], index: 0, kind: input, shape index: {}]
  %s1 = inlined_call_operand.hbm [shape: f32[16,128], index: 1, kind: input, shape index: {}]
  %s2 = inlined_call_operand.hbm [shape: f32[64,128], index: 2, kind: input, shape index: {}]
  %s3 = inlined_call_operand.hbm [shape: f32[128,128], index: 3, kind: output, shape index: {}]
  %s4 = sld [smem:[#allocation0]]
  $region57: #{tpu_custom_call.1} parent=0
    _
  %s6 = ssub.s32 1, %s4
  %s7 = scalar_select 0, %s6, %s4
  $region1: #{tpu_custom_call.1} parent=0
    #allocation2 [shape = 'u8[8192]{0}', space=vmem, size = 0x2000, scoped, tag = 'input window, operand 0']
    #allocation3 [shape = 's32[2]{0}', space=sflag, size = 0x8, scoped, tag = 'scoped memory for tpu_custom_call.1']
    #allocation4 [shape = 's32[2]{0}', space=sflag, size = 0x8, scoped, tag = 'scoped memory for tpu_custom_call.1']
    #allocation5 [shape = 'u8[8192]{0}', space=vmem, size = 0x2000, scoped, tag = 'input window, operand 1, single buffered']
    #allocation6 [shape = 's32[1]{0}', space=sflag, size = 0x4, scoped, tag = 'scoped memory for tpu_custom_call.1']
    #allocation7 [shape = 'u8[32768]{0}', space=vmem, size = 0x8000, scoped, tag = 'input window, operand 2, single buffered']
    #allocation8 [shape = 'u8[65536]{0}', space=vmem, size = 0x10000, scoped, tag = 'output window, operand 0']
    %8 = vsyncpa [#allocation3], 0
    %s9 = scalar_lea.sflag [#allocation3], 1
    %10 = vsyncpa %s9, 0
    %11 = vsyncpa [#allocation6], 0
    %12 = vsyncpa [#allocation4], 0
    %s13 = scalar_lea.sflag [#allocation4], 1
    %14 = vsyncpa %s13, 0
    loop: start=0, step=1, limit=4
    $region2: #{tpu_custom_call.1} parent=1 // loop_pre_header
      _
    $region3: #{tpu_custom_call.1} parent=1 // loop_header
      %s16 = sphi 0, %s20
      %p17 = scmp.ge.s32.totalorder %s16, 4
      %s26 = sphi 0, %s28
      %s29 = sphi 0, %s26
      %s30 = sphi 0, %s29
      %s46 = sphi 0, %s30
      %s50 = sphi 0, %s50
      %s52 = sphi 0, %s50
      %s53 = sphi 0, %s52
      %s67 = sphi 0, %s53
      %s71 = sphi 0, %s71
      %s73 = sphi 0, %s71
      %s74 = sphi 0, %s73
      %s88 = sphi 0, %s74
      %s94 = sphi 0, %s96
      %s97 = sphi 0, %s94
      %s98 = sphi 0, %s97
      %s114 = sphi 0, %s98
    $region4: #{tpu_custom_call.1} parent=1 // loop_header_branch
      %19 = sbr.rel (%p17) target = $region8
    $region5: #{tpu_custom_call.1} parent=1 // loop_body
      %s21 = ssub.s32 %s16, 1
      %s22 = ssub.s32 %s16, 2
      %s23 = sadd.s32 %s16, 1
      %s24 = ssub.s32 %s16, %s23
      %p25 = scmp.eq.s32.totalorder %s24, 0
      %s27 = sadd.s32 %s26, 1
      %s28 = scalar_select %p25, %s26, %s27
      %p31 = pneg %p25
      %p32 = scmp.eq.s32.totalorder %s16, 1
      %p33 = por %p31, %p32
      %p34 = scmp.ne.s32.totalorder %s26, %s29
      %p35 = scmp.eq.s32.totalorder %s16, 0
      %p36 = por %p34, %p35
      %p37 = scmp.ne.s32.totalorder %s26, %s29
      %p38 = scmp.eq.s32.totalorder %s21, 1
      %p39 = por %p37, %p38
      %p40 = scmp.ne.s32.totalorder %s29, %s30
      %p41 = scmp.eq.s32.totalorder %s21, 0
      %p42 = por %p40, %p41
      %p43 = scmp.ne.s32.totalorder %s29, %s30
      %p44 = scmp.eq.s32.totalorder %s22, 1
      %p45 = por %p43, %p44
      %p47 = scmp.ne.s32.totalorder %s30, %s46
      %p48 = scmp.eq.s32.totalorder %s22, 0
      %p49 = por %p47, %p48
      %s51 = sadd.s32 %s50, 1
      %p54 = scmp.eq.s32.totalorder %s16, 1
      %p55 = scmp.ne.s32.totalorder %s50, %s52
      %p56 = scmp.eq.s32.totalorder %s16, 0
      %p57 = por %p55, %p56
      %p58 = scmp.ne.s32.totalorder %s50, %s52
      %p59 = scmp.eq.s32.totalorder %s21, 1
      %p60 = por %p58, %p59
      %p61 = scmp.ne.s32.totalorder %s52, %s53
      %p62 = scmp.eq.s32.totalorder %s21, 0
      %p63 = por %p61, %p62
      %p64 = scmp.ne.s32.totalorder %s52, %s53
      %p65 = scmp.eq.s32.totalorder %s22, 1
      %p66 = por %p64, %p65
      %p68 = scmp.ne.s32.totalorder %s53, %s67
      %p69 = scmp.eq.s32.totalorder %s22, 0
      %p70 = por %p68, %p69
      %s72 = sadd.s32 %s71, 1
      %p75 = scmp.eq.s32.totalorder %s16, 1
      %p76 = scmp.ne.s32.totalorder %s71, %s73
      %p77 = scmp.eq.s32.totalorder %s16, 0
      %p78 = por %p76, %p77
      %p79 = scmp.ne.s32.totalorder %s71, %s73
      %p80 = scmp.eq.s32.totalorder %s21, 1
      %p81 = por %p79, %p80
      %p82 = scmp.ne.s32.totalorder %s73, %s74
      %p83 = scmp.eq.s32.totalorder %s21, 0
      %p84 = por %p82, %p83
      %p85 = scmp.ne.s32.totalorder %s73, %s74
      %p86 = scmp.eq.s32.totalorder %s22, 1
      %p87 = por %p85, %p86
      %p89 = scmp.ne.s32.totalorder %s74, %s88
      %p90 = scmp.eq.s32.totalorder %s22, 0
      %p91 = por %p89, %p90
      %s92 = ssub.s32 %s16, %s23
      %p93 = scmp.eq.s32.totalorder %s92, 0
      %s95 = sadd.s32 %s94, 1
      %s96 = scalar_select %p93, %s94, %s95
      %p99 = pneg %p93
      %p100 = scmp.eq.s32.totalorder %s16, 1
      %p101 = por %p99, %p100
      %p102 = scmp.ne.s32.totalorder %s94, %s97
      %p103 = scmp.eq.s32.totalorder %s16, 0
      %p104 = por %p102, %p103
      %p105 = scmp.ne.s32.totalorder %s94, %s97
      %p106 = scmp.eq.s32.totalorder %s21, 1
      %p107 = por %p105, %p106
      %p108 = scmp.ne.s32.totalorder %s97, %s98
      %p109 = scmp.eq.s32.totalorder %s21, 0
      %p110 = por %p108, %p109
      %p111 = scmp.ne.s32.totalorder %s97, %s98
      %p112 = scmp.eq.s32.totalorder %s22, 1
      %p113 = por %p111, %p112
      %p115 = scmp.ne.s32.totalorder %s98, %s114
      %p116 = scmp.eq.s32.totalorder %s22, 0
      %p117 = por %p115, %p116
      %p118 = scmp.le.s32.totalorder 1, %s16
      %p119 = scmp.lt.s32.totalorder %s16, 3
      %p120 = pnand %p118, %p119
      %p121 = pneg %p120
      // Predicated region
      $region9: #{tpu_custom_call.1} parent=5 // pred_check
        _
      $region10: #{tpu_custom_call.1} parent=5 // pred_check_branch
        %123 = sbr.rel (%p120) target = $region12
      $region11: #{tpu_custom_call.1} parent=5 // pred_region
        %s124 = ssub.s32 %s16, 1
        // Predicated region
        $region13: #{tpu_custom_call.1} parent=11 // pred_check
          %p125 = pneg %p63
        $region14: #{tpu_custom_call.1} parent=11 // pred_check_branch
          %127 = sbr.rel (%p125) target = $region16
        $region15: #{tpu_custom_call.1} parent=11 // pred_region
          %s129 = ssub.s32 256, 256
          %130 = vsyncadd [#allocation6], %s129
          %s131 = sshll.u32 [#allocation5], 4
          %s132 = int_to_ptr.vmem [resolvable:$true] %s131
          %137 = dma.hbm_to_vmem [thread:$0]  %s1, 256, %s132, [#allocation6], 128, 128, 8
        $region16: #{tpu_custom_call.1} parent=11 // pred_fallthru
          _
        // Predicated region
        $region17: #{tpu_custom_call.1} parent=11 // pred_check
          %p138 = pneg %p84
        $region18: #{tpu_custom_call.1} parent=11 // pred_check_branch
          %140 = sbr.rel (%p138) target = $region20
        $region19: #{tpu_custom_call.1} parent=11 // pred_region
          %s142 = ssub.s32 1024, 1024
          %143 = vsyncadd [#allocation6], %s142
          %s144 = sshll.u32 [#allocation7], 4
          %s145 = int_to_ptr.vmem [resolvable:$true] %s144
          %150 = dma.hbm_to_vmem [thread:$0]  %s2, 1024, %s145, [#allocation6], 128, 128, 8
        $region20: #{tpu_custom_call.1} parent=11 // pred_fallthru
          _
      $region12: #{tpu_custom_call.1} parent=5 // pred_fallthru
        _
      %p151 = scmp.lt.s32.totalorder %s16, 2
      // Predicated region
      $region21: #{tpu_custom_call.1} parent=5 // pred_check
        %p152 = pneg %p151
      $region22: #{tpu_custom_call.1} parent=5 // pred_check_branch
        %154 = sbr.rel (%p152) target = $region24
      $region23: #{tpu_custom_call.1} parent=5 // pred_region
        // Predicated region
        $region25: #{tpu_custom_call.1} parent=23 // pred_check
          %p155 = pneg %p36
        $region26: #{tpu_custom_call.1} parent=23 // pred_check_branch
          %157 = sbr.rel (%p155) target = $region28
        $region27: #{tpu_custom_call.1} parent=23 // pred_region
          %s158 = sand.u32 %s26, 1
          %s159 = scalar_lea.sflag [#allocation3], %s158
          %s160 = sand.u32 %s26, 1
          %s161 = smul.addr %s160, 8
          %s162 = scalar_lea.vmem [#allocation2], %s161
          %s164 = ssub.s32 128, 128
          %165 = vsyncadd %s159, %s164
          %s166 = smul.addr %s16, 128
          %s167 = scalar_lea.hbm %s0, %s166
          %s169 = sshll.u32 %s162, 4
          %s170 = int_to_ptr.vmem [resolvable:$true] %s169
          %172 = dma.hbm_to_vmem [thread:$0]  %s167, 128, %s170, %s159
        $region28: #{tpu_custom_call.1} parent=23 // pred_fallthru
          _
      $region24: #{tpu_custom_call.1} parent=5 // pred_fallthru
        _
      %p173 = scmp.le.s32.totalorder 1, %s16
      %p174 = scmp.lt.s32.totalorder %s16, 3
      %p175 = pnand %p173, %p174
      %p176 = pneg %p175
      // Predicated region
      $region29: #{tpu_custom_call.1} parent=5 // pred_check
        _
      $region30: #{tpu_custom_call.1} parent=5 // pred_check_branch
        %178 = sbr.rel (%p175) target = $region32
      $region31: #{tpu_custom_call.1} parent=5 // pred_region
        %s179 = ssub.s32 %s16, 1
        %s180 = sand.u32 %s29, 1
        %s181 = scalar_lea.sflag [#allocation3], %s180
        %s182 = sand.u32 %s29, 1
        %s183 = smul.addr %s182, 8
        %s184 = scalar_lea.vmem [#allocation2], %s183
        // Predicated region
        $region33: #{tpu_custom_call.1} parent=31 // pred_check
          %p185 = pneg %p42
        $region34: #{tpu_custom_call.1} parent=31 // pred_check_branch
          %187 = sbr.rel (%p185) target = $region36
        $region35: #{tpu_custom_call.1} parent=31 // pred_region
          %188 = dma.done %s181, 128
        $region36: #{tpu_custom_call.1} parent=31 // pred_fallthru
          _
        // Predicated region
        $region37: #{tpu_custom_call.1} parent=31 // pred_check
          %p189 = pneg %p63
        $region38: #{tpu_custom_call.1} parent=31 // pred_check_branch
          %191 = sbr.rel (%p189) target = $region40
        $region39: #{tpu_custom_call.1} parent=31 // pred_region
          %192 = dma.done [#allocation6], 256
        $region40: #{tpu_custom_call.1} parent=31 // pred_fallthru
          _
        // Predicated region
        $region41: #{tpu_custom_call.1} parent=31 // pred_check
          %p193 = pneg %p84
        $region42: #{tpu_custom_call.1} parent=31 // pred_check_branch
          %195 = sbr.rel (%p193) target = $region44
        $region43: #{tpu_custom_call.1} parent=31 // pred_region
          %196 = dma.done [#allocation6], 1024
        $region44: #{tpu_custom_call.1} parent=31 // pred_fallthru
          _
        %s197 = sand.u32 %s29, 1
        %s198 = scalar_lea.sflag [#allocation3], %s197
        %s199 = sand.u32 %s29, 1
        %s200 = smul.addr %s199, 8
        %s201 = scalar_lea.vmem [#allocation2], %s200
        %p202 = pneg %p42
        %p203 = pneg %p39
        %p204 = pneg %p63
        %p205 = pneg %p60
        %p206 = pneg %p84
        %p207 = pneg %p81
        %p208 = pneg %p110
        %p209 = pneg %p107
        %s210 = sand.u32 %s97, 1
        %s211 = scalar_lea.sflag [#allocation4], %s210
        %s212 = sand.u32 %s97, 1
        %s213 = smul.addr %s212, 64
        %s214 = scalar_lea.vmem [#allocation8], %s213
        %s215 = smul.u32 8, %s21
        %v216 = vld [vmem:[%s184] sm:$0xff]
        %v218 = vcombine.high %v216, %v216
        %v220 = vunpack.c.l.s4 1966171168
        %v221 = vunpack.c.0.s8 %v220
        %v222 = vlaneseq
        %v223 = vshrl.u32 %v222, 7
        %v224 = vsub.s32 %v221, %v223
        %v225 = vrot.slane %v216, %v224
        %v227 = vunpack.c.l.s4 1966171168
        %v228 = vunpack.c.0.s8 %v227
        %v229 = vlaneseq
        %v230 = vshrl.u32 %v229, 7
        %v231 = vsub.s32 %v228, %v230
        %v232 = vrot.slane %v218, %v231
        %v233 = vcombine.high %v225, %v225
        %v234 = vcombine.high %v232, %v232
        %v236 = vunpack.c.l.s4 1966171168
        %v237 = vunpack.c.0.s8 %v236
        %v238 = vlaneseq
        %v239 = vshrl.u32 %v238, 7
        %v240 = vsub.s32 %v237, %v239
        %v241 = vrot.slane %v225, %v240
        %v243 = vunpack.c.l.s4 1966171168
        %v244 = vunpack.c.0.s8 %v243
        %v245 = vlaneseq
        %v246 = vshrl.u32 %v245, 7
        %v247 = vsub.s32 %v244, %v246
        %v248 = vrot.slane %v232, %v247
        %v250 = vunpack.c.l.s4 1966171168
        %v251 = vunpack.c.0.s8 %v250
        %v252 = vlaneseq
        %v253 = vshrl.u32 %v252, 7
        %v254 = vsub.s32 %v251, %v253
        %v255 = vrot.slane %v233, %v254
        %v257 = vunpack.c.l.s4 1966171168
        %v258 = vunpack.c.0.s8 %v257
        %v259 = vlaneseq
        %v260 = vshrl.u32 %v259, 7
        %v261 = vsub.s32 %v258, %v260
        %v262 = vrot.slane %v234, %v261
        %v263 = vcombine.high %v241, %v241
        %v264 = vcombine.high %v248, %v248
        %v265 = vcombine.high %v255, %v255
        %v266 = vcombine.high %v262, %v262
        %v275 = vlaneseq
        %v276 = vshrl.u32 %v275, 7
        %v277 = vsub.s32 0, %v276
        %v278 = vrot.slane %v241, %v277
        %v279 = vlaneseq
        %v280 = vshrl.u32 %v279, 7
        %v281 = vsub.s32 0, %v280
        %v282 = vrot.slane %v255, %v281
        %v283 = vlaneseq
        %v284 = vshrl.u32 %v283, 7
        %v285 = vsub.s32 0, %v284
        %v286 = vrot.slane %v263, %v285
        %v287 = vlaneseq
        %v288 = vshrl.u32 %v287, 7
        %v289 = vsub.s32 0, %v288
        %v290 = vrot.slane %v265, %v289
        %v291 = vlaneseq
        %v292 = vshrl.u32 %v291, 7
        %v293 = vsub.s32 0, %v292
        %v294 = vrot.slane %v248, %v293
        %v295 = vlaneseq
        %v296 = vshrl.u32 %v295, 7
        %v297 = vsub.s32 0, %v296
        %v298 = vrot.slane %v262, %v297
        %v299 = vlaneseq
        %v300 = vshrl.u32 %v299, 7
        %v301 = vsub.s32 0, %v300
        %v302 = vrot.slane %v264, %v301
        %v303 = vlaneseq
        %v304 = vshrl.u32 %v303, 7
        %v305 = vsub.s32 0, %v304
        %v306 = vrot.slane %v266, %v305
        %307 = vrot.lane.b32.xlu0 %v278, 120
        %v308 = vpop.permute.xlu0 %307
        %309 = vrot.lane.b32.xlu0 %v282, 120
        %v310 = vpop.permute.xlu0 %309
        %311 = vrot.lane.b32.xlu0 %v286, 120
        %v312 = vpop.permute.xlu0 %311
        %313 = vrot.lane.b32.xlu0 %v290, 120
        %v314 = vpop.permute.xlu0 %313
        %315 = vrot.lane.b32.xlu0 %v294, 120
        %v316 = vpop.permute.xlu0 %315
        %317 = vrot.lane.b32.xlu0 %v298, 120
        %v318 = vpop.permute.xlu0 %317
        %319 = vrot.lane.b32.xlu0 %v302, 120
        %v320 = vpop.permute.xlu0 %319
        %321 = vrot.lane.b32.xlu0 %v306, 120
        %v322 = vpop.permute.xlu0 %321
        %331 = vrot.lane.b32.xlu0 %v278, 112
        %v332 = vpop.permute.xlu0 %331
        %333 = vrot.lane.b32.xlu0 %v282, 112
        %v334 = vpop.permute.xlu0 %333
        %335 = vrot.lane.b32.xlu0 %v286, 112
        %v336 = vpop.permute.xlu0 %335
        %337 = vrot.lane.b32.xlu0 %v290, 112
        %v338 = vpop.permute.xlu0 %337
        %339 = vrot.lane.b32.xlu0 %v294, 112
        %v340 = vpop.permute.xlu0 %339
        %341 = vrot.lane.b32.xlu0 %v298, 112
        %v342 = vpop.permute.xlu0 %341
        %343 = vrot.lane.b32.xlu0 %v302, 112
        %v344 = vpop.permute.xlu0 %343
        %345 = vrot.lane.b32.xlu0 %v306, 112
        %v346 = vpop.permute.xlu0 %345
        %355 = vrot.lane.b32.xlu0 %v278, 104
        %v356 = vpop.permute.xlu0 %355
        %357 = vrot.lane.b32.xlu0 %v282, 104
        %v358 = vpop.permute.xlu0 %357
        %359 = vrot.lane.b32.xlu0 %v286, 104
        %v360 = vpop.permute.xlu0 %359
        %361 = vrot.lane.b32.xlu0 %v290, 104
        %v362 = vpop.permute.xlu0 %361
        %363 = vrot.lane.b32.xlu0 %v294, 104
        %v364 = vpop.permute.xlu0 %363
        %365 = vrot.lane.b32.xlu0 %v298, 104
        %v366 = vpop.permute.xlu0 %365
        %367 = vrot.lane.b32.xlu0 %v302, 104
        %v368 = vpop.permute.xlu0 %367
        %369 = vrot.lane.b32.xlu0 %v306, 104
        %v370 = vpop.permute.xlu0 %369
        %379 = vrot.lane.b32.xlu0 %v278, 96
        %v380 = vpop.permute.xlu0 %379
        %381 = vrot.lane.b32.xlu0 %v282, 96
        %v382 = vpop.permute.xlu0 %381
        %383 = vrot.lane.b32.xlu0 %v286, 96
        %v384 = vpop.permute.xlu0 %383
        %385 = vrot.lane.b32.xlu0 %v290, 96
        %v386 = vpop.permute.xlu0 %385
        %387 = vrot.lane.b32.xlu0 %v294, 96
        %v388 = vpop.permute.xlu0 %387
        %389 = vrot.lane.b32.xlu0 %v298, 96
        %v390 = vpop.permute.xlu0 %389
        %391 = vrot.lane.b32.xlu0 %v302, 96
        %v392 = vpop.permute.xlu0 %391
        %393 = vrot.lane.b32.xlu0 %v306, 96
        %v394 = vpop.permute.xlu0 %393
        %403 = vrot.lane.b32.xlu0 %v278, 88
        %v404 = vpop.permute.xlu0 %403
        %405 = vrot.lane.b32.xlu0 %v282, 88
        %v406 = vpop.permute.xlu0 %405
        %407 = vrot.lane.b32.xlu0 %v286, 88
        %v408 = vpop.permute.xlu0 %407
        %409 = vrot.lane.b32.xlu0 %v290, 88
        %v410 = vpop.permute.xlu0 %409
        %411 = vrot.lane.b32.xlu0 %v294, 88
        %v412 = vpop.permute.xlu0 %411
        %413 = vrot.lane.b32.xlu0 %v298, 88
        %v414 = vpop.permute.xlu0 %413
        %415 = vrot.lane.b32.xlu0 %v302, 88
        %v416 = vpop.permute.xlu0 %415
        %417 = vrot.lane.b32.xlu0 %v306, 88
        %v418 = vpop.permute.xlu0 %417
        %427 = vrot.lane.b32.xlu0 %v278, 80
        %v428 = vpop.permute.xlu0 %427
        %429 = vrot.lane.b32.xlu0 %v282, 80
        %v430 = vpop.permute.xlu0 %429
        %431 = vrot.lane.b32.xlu0 %v286, 80
        %v432 = vpop.permute.xlu0 %431
        %433 = vrot.lane.b32.xlu0 %v290, 80
        %v434 = vpop.permute.xlu0 %433
        %435 = vrot.lane.b32.xlu0 %v294, 80
        %v436 = vpop.permute.xlu0 %435
        %437 = vrot.lane.b32.xlu0 %v298, 80
        %v438 = vpop.permute.xlu0 %437
        %439 = vrot.lane.b32.xlu0 %v302, 80
        %v440 = vpop.permute.xlu0 %439
        %441 = vrot.lane.b32.xlu0 %v306, 80
        %v442 = vpop.permute.xlu0 %441
        %451 = vrot.lane.b32.xlu0 %v278, 72
        %v452 = vpop.permute.xlu0 %451
        %453 = vrot.lane.b32.xlu0 %v282, 72
        %v454 = vpop.permute.xlu0 %453
        %455 = vrot.lane.b32.xlu0 %v286, 72
        %v456 = vpop.permute.xlu0 %455
        %457 = vrot.lane.b32.xlu0 %v290, 72
        %v458 = vpop.permute.xlu0 %457
        %459 = vrot.lane.b32.xlu0 %v294, 72
        %v460 = vpop.permute.xlu0 %459
        %461 = vrot.lane.b32.xlu0 %v298, 72
        %v462 = vpop.permute.xlu0 %461
        %463 = vrot.lane.b32.xlu0 %v302, 72
        %v464 = vpop.permute.xlu0 %463
        %465 = vrot.lane.b32.xlu0 %v306, 72
        %v466 = vpop.permute.xlu0 %465
        %vm475 = vcmask 1040384
        %v476 = vsel %vm475, %v241, %v308
        %v477 = vsel %vm475, %v255, %v310
        %v478 = vsel %vm475, %v263, %v312
        %v479 = vsel %vm475, %v265, %v314
        %v480 = vsel %vm475, %v248, %v316
        %v481 = vsel %vm475, %v262, %v318
        %v482 = vsel %vm475, %v264, %v320
        %v483 = vsel %vm475, %v266, %v322
        %vm484 = vcmask 1041408
        %v485 = vsel %vm484, %v476, %v332
        %v486 = vsel %vm484, %v477, %v334
        %v487 = vsel %vm484, %v478, %v336
        %v488 = vsel %vm484, %v479, %v338
        %v489 = vsel %vm484, %v480, %v340
        %v490 = vsel %vm484, %v481, %v342
        %v491 = vsel %vm484, %v482, %v344
        %v492 = vsel %vm484, %v483, %v346
        %vm493 = vcmask 1042432
        %v494 = vsel %vm493, %v485, %v356
        %v495 = vsel %vm493, %v486, %v358
        %v496 = vsel %vm493, %v487, %v360
        %v497 = vsel %vm493, %v488, %v362
        %v498 = vsel %vm493, %v489, %v364
        %v499 = vsel %vm493, %v490, %v366
        %v500 = vsel %vm493, %v491, %v368
        %v501 = vsel %vm493, %v492, %v370
        %vm502 = vcmask 1043456
        %v503 = vsel %vm502, %v494, %v380
        %v504 = vsel %vm502, %v495, %v382
        %v505 = vsel %vm502, %v496, %v384
        %v506 = vsel %vm502, %v497, %v386
        %v507 = vsel %vm502, %v498, %v388
        %v508 = vsel %vm502, %v499, %v390
        %v509 = vsel %vm502, %v500, %v392
        %v510 = vsel %vm502, %v501, %v394
        %vm511 = vcmask 1044480
        %v512 = vsel %vm511, %v503, %v404
        %v513 = vsel %vm511, %v504, %v406
        %v514 = vsel %vm511, %v505, %v408
        %v515 = vsel %vm511, %v506, %v410
        %v516 = vsel %vm511, %v507, %v412
        %v517 = vsel %vm511, %v508, %v414
        %v518 = vsel %vm511, %v509, %v416
        %v519 = vsel %vm511, %v510, %v418
        %vm520 = vcmask 1045504
        %v521 = vsel %vm520, %v512, %v428
        %v522 = vsel %vm520, %v513, %v430
        %v523 = vsel %vm520, %v514, %v432
        %v524 = vsel %vm520, %v515, %v434
        %v525 = vsel %vm520, %v516, %v436
        %v526 = vsel %vm520, %v517, %v438
        %v527 = vsel %vm520, %v518, %v440
        %v528 = vsel %vm520, %v519, %v442
        %vm529 = vcmask 1046528
        %v530 = vsel %vm529, %v521, %v452
        %v531 = vsel %vm529, %v522, %v454
        %v532 = vsel %vm529, %v523, %v456
        %v533 = vsel %vm529, %v524, %v458
        %v534 = vsel %vm529, %v525, %v460
        %v535 = vsel %vm529, %v526, %v462
        %v536 = vsel %vm529, %v527, %v464
        %v537 = vsel %vm529, %v528, %v466
        %v538 = vld [vmem:[#allocation5] sm:$0xff]
        %v539 = vld [vmem:[#allocation5 + $0x8] sm:$0xff]
        %v540 = vld [vmem:[#allocation7] sm:$0xff]
        %v541 = vld [vmem:[#allocation7 + $0x8] sm:$0xff]
        %v542 = vld [vmem:[#allocation7 + $0x10] sm:$0xff]
        %v543 = vld [vmem:[#allocation7 + $0x18] sm:$0xff]
        %v544 = vld [vmem:[#allocation7 + $0x20] sm:$0xff]
        %v545 = vld [vmem:[#allocation7 + $0x28] sm:$0xff]
        %v546 = vld [vmem:[#allocation7 + $0x30] sm:$0xff]
        %v547 = vld [vmem:[#allocation7 + $0x38] sm:$0xff]
        %vm548 = vcmask 130048
        %v550 = vsel %vm548, %v530, 0
        %v553 = vsel %vm548, %v531, 0
        %v556 = vsel %vm548, %v532, 0
        %v559 = vsel %vm548, %v533, 0
        %v562 = vsel %vm548, %v534, 0
        %v565 = vsel %vm548, %v535, 0
        %v568 = vsel %vm548, %v536, 0
        %v571 = vsel %vm548, %v537, 0
        %573 = vmatprep.subr.mxu0 0.0
        %574 = vmatpush1.msra.mxu0 %v538
        %575 = vmatprep.subr.mxu0 0.0
        %576 = vmatpush1.msra.mxu0 %v539
        %577 = vmatprep.subr.mxu0 0.0
        %578 = vmatpush1.msra.mxu0 0.0
        %579 = vmatprep.subr.mxu0 0.0
        %580 = vmatpush1.msra.mxu0 0.0
        %581 = vmatprep.subr.mxu0 0.0
        %582 = vmatpush1.msra.mxu0 0.0
        %583 = vmatprep.subr.mxu0 0.0
        %584 = vmatpush1.msra.mxu0 0.0
        %585 = vmatprep.subr.mxu0 0.0
        %586 = vmatpush1.msra.mxu0 0.0
        %587 = vmatprep.subr.mxu0 0.0
        %588 = vmatpush1.msra.mxu0 0.0
        %589 = vmatprep.subr.mxu0 0.0
        %590 = vmatpush1.msra.mxu0 0.0
        %591 = vmatprep.subr.mxu0 0.0
        %592 = vmatpush1.msra.mxu0 0.0
        %593 = vmatprep.subr.mxu0 0.0
        %594 = vmatpush1.msra.mxu0 0.0
        %595 = vmatprep.subr.mxu0 0.0
        %596 = vmatpush1.msra.mxu0 0.0
        %597 = vmatprep.subr.mxu0 0.0
        %598 = vmatpush1.msra.mxu0 0.0
        %599 = vmatprep.subr.mxu0 0.0
        %600 = vmatpush1.msra.mxu0 0.0
        %601 = vmatprep.subr.mxu0 0.0
        %602 = vmatpush1.msra.mxu0 0.0
        %603 = vmatprep.subr.mxu0 0.0
        %604 = vmatpush1.msra.mxu0 0.0
        %605 = vmatprep.subr.mxu0 0.0
        %606 = vmatpush1.msra.mxu0 0.0
        %607 = vmatprep.subr.mxu0 0.0
        %608 = vmatpush1.msra.mxu0 0.0
        %609 = vmatprep.subr.mxu0 0.0
        %610 = vmatpush1.msra.mxu0 0.0
        %611 = vmatprep.subr.mxu0 0.0
        %612 = vmatpush1.msra.mxu0 0.0
        %613 = vmatprep.subr.mxu0 0.0
        %614 = vmatpush1.msra.mxu0 0.0
        %615 = vmatprep.subr.mxu0 0.0
        %616 = vmatpush1.msra.mxu0 0.0
        %617 = vmatprep.subr.mxu0 0.0
        %618 = vmatpush1.msra.mxu0 0.0
        %619 = vmatprep.subr.mxu0 0.0
        %620 = vmatpush1.msra.mxu0 0.0
        %621 = vmatprep.subr.mxu0 0.0
        %622 = vmatpush1.msra.mxu0 0.0
        %623 = vmatprep.subr.mxu0 0.0
        %624 = vmatpush1.msra.mxu0 0.0
        %625 = vmatprep.subr.mxu0 0.0
        %626 = vmatpush1.msra.mxu0 0.0
        %627 = vmatprep.subr.mxu0 0.0
        %628 = vmatpush1.msra.mxu0 0.0
        %629 = vmatprep.subr.mxu0 0.0
        %630 = vmatpush1.msra.mxu0 0.0
        %631 = vmatprep.subr.mxu0 0.0
        %632 = vmatpush1.msra.mxu0 0.0
        %633 = vmatprep.subr.mxu0 0.0
        %634 = vmatpush1.msra.mxu0 0.0
        %635 = vmatprep.subr.mxu0 0.0
        %636 = vmatpush1.msra.mxu0 0.0
        %637 = vmatprep.mubr.f32.mxu0 0.0
        %638 = vmatmul.mubr.f32.gmra.mrb[0].mxu0 %v550
        %v639 = vpop.f32.mrb[0].mxu0
        %v640 = vadd.f32 %v540, %v639
        %v641 = vpop.f32.mrb[0].mxu0
        %642 = vmatprep.mubr.f32.mxu0 0.0
        %643 = vmatmul.mubr.f32.gmra.mrb[0].mxu0 %v553
        %v644 = vpop.f32.mrb[0].mxu0
        %v645 = vadd.f32 %v541, %v644
        %v646 = vpop.f32.mrb[0].mxu0
        %647 = vmatprep.mubr.f32.mxu0 0.0
        %648 = vmatmul.mubr.f32.gmra.mrb[0].mxu0 %v556
        %v649 = vpop.f32.mrb[0].mxu0
        %v650 = vadd.f32 %v542, %v649
        %v651 = vpop.f32.mrb[0].mxu0
        %652 = vmatprep.mubr.f32.mxu0 0.0
        %653 = vmatmul.mubr.f32.gmra.mrb[0].mxu0 %v559
        %v654 = vpop.f32.mrb[0].mxu0
        %v655 = vadd.f32 %v543, %v654
        %v656 = vpop.f32.mrb[0].mxu0
        %657 = vmatprep.mubr.f32.mxu0 0.0
        %658 = vmatmul.mubr.f32.gmra.mrb[0].mxu0 %v562
        %v659 = vpop.f32.mrb[0].mxu0
        %v660 = vadd.f32 %v544, %v659
        %v661 = vpop.f32.mrb[0].mxu0
        %662 = vmatprep.mubr.f32.mxu0 0.0
        %663 = vmatmul.mubr.f32.gmra.mrb[0].mxu0 %v565
        %v664 = vpop.f32.mrb[0].mxu0
        %v665 = vadd.f32 %v545, %v664
        %v666 = vpop.f32.mrb[0].mxu0
        %667 = vmatprep.mubr.f32.mxu0 0.0
        %668 = vmatmul.mubr.f32.gmra.mrb[0].mxu0 %v568
        %v669 = vpop.f32.mrb[0].mxu0
        %v670 = vadd.f32 %v546, %v669
        %v671 = vpop.f32.mrb[0].mxu0
        %672 = vmatprep.mubr.f32.mxu0 0.0
        %673 = vmatmul.mubr.f32.gmra.mrb[0].mxu0 %v571
        %v674 = vpop.f32.mrb[0].mxu0
        %v675 = vadd.f32 %v547, %v674
        %v676 = vpop.f32.mrb[0].mxu0
        %677 = vdwg.mxu0
        %678 = vst [vmem:[%s214] sm:$0xff] %v640
        %679 = vst [vmem:[%s214 + $0x8] sm:$0xff] %v645
        %680 = vst [vmem:[%s214 + $0x10] sm:$0xff] %v650
        %681 = vst [vmem:[%s214 + $0x18] sm:$0xff] %v655
        %682 = vst [vmem:[%s214 + $0x20] sm:$0xff] %v660
        %683 = vst [vmem:[%s214 + $0x28] sm:$0xff] %v665
        %684 = vst [vmem:[%s214 + $0x30] sm:$0xff] %v670
        %685 = vst [vmem:[%s214 + $0x38] sm:$0xff] %v675
        %s686 = sand.u32 %s97, 1
        %s687 = scalar_lea.sflag [#allocation4], %s686
        %s688 = sand.u32 %s97, 1
        %s689 = smul.addr %s688, 64
        %s690 = scalar_lea.vmem [#allocation8], %s689
        // Predicated region
        $region45: #{tpu_custom_call.1} parent=31 // pred_check
          %p691 = pneg %p107
        $region46: #{tpu_custom_call.1} parent=31 // pred_check_branch
          %693 = sbr.rel (%p691) target = $region48
        $region47: #{tpu_custom_call.1} parent=31 // pred_region
          %s694 = smul.u32 8, %s21
          %s696 = ssub.s32 1024, 1024
          %697 = vsyncadd %s687, %s696
          %s698 = smul.addr %s694, 128
          %s699 = scalar_lea.hbm %s3, %s698
          %s700 = sshll.u32 %s690, 4
          %s701 = int_to_ptr.vmem [resolvable:$true] %s700
          %706 = dma.vmem_to_hbm [thread:$0]  %s701, 1024, %s699, %s687, 128, 128, 8
        $region48: #{tpu_custom_call.1} parent=31 // pred_fallthru
          _
      $region32: #{tpu_custom_call.1} parent=5 // pred_fallthru
        _
      %p707 = scmp.le.s32.totalorder 2, %s16
      // Predicated region
      $region49: #{tpu_custom_call.1} parent=5 // pred_check
        %p708 = pneg %p707
      $region50: #{tpu_custom_call.1} parent=5 // pred_check_branch
        %710 = sbr.rel (%p708) target = $region52
      $region51: #{tpu_custom_call.1} parent=5 // pred_region
        %s711 = ssub.s32 %s16, 2
        // Predicated region
        $region53: #{tpu_custom_call.1} parent=51 // pred_check
          %p712 = pneg %p113
        $region54: #{tpu_custom_call.1} parent=51 // pred_check_branch
          %714 = sbr.rel (%p712) target = $region56
        $region55: #{tpu_custom_call.1} parent=51 // pred_region
          %s715 = sand.u32 %s98, 1
          %s716 = scalar_lea.sflag [#allocation4], %s715
          %s717 = sand.u32 %s98, 1
          %s718 = smul.addr %s717, 64
          %s719 = scalar_lea.vmem [#allocation8], %s718
          %720 = dma.done %s716, 1024
        $region56: #{tpu_custom_call.1} parent=51 // pred_fallthru
          _
      $region52: #{tpu_custom_call.1} parent=5 // pred_fallthru
        _
    $region6: #{tpu_custom_call.1} parent=1 // loop_footer
      %s20 = sadd.s32 1, %s16
    $region7: #{tpu_custom_call.1} parent=1 // loop_footer_branch
      %15 = sbr.rel target = $region3
    $region8: #{tpu_custom_call.1} parent=1 // loop_exit
      _
    %721 = vsyncpa [#allocation3], 1
    %s722 = scalar_lea.sflag [#allocation3], 1
    %723 = vsyncpa %s722, 1
    %724 = vsyncpa [#allocation6], 1
    %725 = vsyncpa [#allocation4], 1
    %s726 = scalar_lea.sflag [#allocation4], 1
    %727 = vsyncpa %s726, 1

</llo_original>
